<compile_context>
chip_gen: v7x
topology: tpu7x:2x2x1
jax: 0.10.0
libtpu: 0.0.40
codegen_flags: <defaults>
</compile_context>

<pallas_src>
import functools

import jax
import jax.numpy as jnp
import numpy as np
from jax import lax
from jax.experimental import pallas as pl
from jax.experimental.pallas import tpu as pltpu

BN_EPS = 1e-5


# ------------------------------ fused kernel ------------------------------- #

def _shift_lanes(a, s):
    """b[:, i] = a[:, i + s], zero-filled outside [0, L).  `s` is static."""
    if s == 0:
        return a
    rows, cols = a.shape
    fill = jnp.zeros((rows, abs(s)), a.dtype)
    if s > 0:
        return jnp.concatenate([a[:, s:], fill], axis=1)
    return jnp.concatenate([fill, a[:, :cols + s]], axis=1)


def _bottleneck_kernel(x_ref, w1_ref, w2_ref, w3_ref,
                       b1_ref, b2_ref, b3_ref, m_ref, o_ref, *, W):
    """One group of Bt images per grid step, channel-major (C, Bt*H*W)."""
    x_bf16 = x_ref[0].astype(jnp.bfloat16)                # (cin, L) MXU operand

    # ---- conv1 (1x1, BN scale folded into w1) + bias + relu ----------------
    y1 = jnp.dot(w1_ref[...], x_bf16, preferred_element_type=jnp.float32)
    y1 = jnp.maximum(y1 + b1_ref[...], 0.0)               # (pad_planes, L) f32

    # ---- conv2 (3x3, stride 1, pad 1) as ONE wide-K matmul -----------------
    # Build the 9 lane-shifted taps (f32, sublane-tile aligned because conv1's
    # channels were padded to a multiple of 8), mask invalid positions (row
    # AND column validity -- mandatory with several images packed in the lane
    # axis), stack along the contraction axis and do a single MXU dot.
    masks = m_ref[...]                                     # (9, L) f32 {0,1}
    taps = []
    for dh in range(3):
        for dw in range(3):
            k = dh * 3 + dw
            shift = (dh - 1) * W + (dw - 1)
            t = _shift_lanes(y1, shift)
            if k != 4:                                     # center tap: all valid
                t = t * masks[k:k + 1]
            taps.append(t)
    stacked = jnp.concatenate(taps, axis=0).astype(jnp.bfloat16)  # (9*pp, L)
    y2 = jnp.dot(w2_ref[...], stacked, preferred_element_type=jnp.float32)
    y2 = jnp.maximum(y2 + b2_ref[...], 0.0).astype(jnp.bfloat16)  # (planes, L)

    # ---- conv3 (1x1) + bias + residual + relu (residual read deferred) -----
    y3 = jnp.dot(w3_ref[...], y2, preferred_element_type=jnp.float32)
    out = jnp.maximum(y3 + b3_ref[...] + x_ref[0], 0.0)
    o_ref[0] = out.astype(o_ref.dtype)                     # lane-dense store


# -------------------------------- wrapper ----------------------------------- #

def _fold_bn(gamma, beta, mean, var):
    scale = gamma / jnp.sqrt(var + BN_EPS)
    bias = beta - mean * scale
    return scale, bias


def _pick_images_per_step(n, max_bt=8):
    """Largest divisor of n up to max_bt, preferring >= 2 grid steps so both
    v7x TensorCores get work.  (On v6e/v5e with 128 MiB VMEM max_bt could be
    raised; on v7x keep the per-step block comfortably under ~48 MiB.)"""
    divisors = [d for d in range(1, min(n, max_bt) + 1) if n % d == 0]
    multi = [d for d in divisors if n // d >= 2]
    return max(multi) if multi else max(divisors)


def bottleneck_forward(x_nchw, w1_oihw, w2_oihw, w3_oihw, bn1, bn2, bn3,
                       images_per_step=None):
    """Fused Bottleneck (stride=1, downsample=None).  NCHW f32 in / out."""
    N, cin, H, W = x_nchw.shape
    HW = H * W
    planes = w1_oihw.shape[0]
    cout = w3_oihw.shape[0]
    assert cout == planes * 4 and cin == cout, \
        "downsample=None requires inplanes == planes * 4"

    # conv1 output channels padded to the f32 sublane tile (8) so the in-kernel
    # tap stacking is an aligned concatenate.  Padded rows carry zeros.
    pad_planes = -(-planes // 8) * 8

    s1, b1 = _fold_bn(*bn1)
    s2, b2 = _fold_bn(*bn2)
    s3, b3 = _fold_bn(*bn3)

    # Fold BN scales into the conv weights in f32 BEFORE the bf16 cast.
    w1 = s1[:, None] * w1_oihw[:, :, 0, 0]                       # (planes, cin)
    w1 = jnp.pad(w1, ((0, pad_planes - planes), (0, 0))).astype(jnp.bfloat16)
    b1p = jnp.pad(b1, (0, pad_planes - planes))[:, None]         # f32

    w2 = s2[:, None, None, None] * w2_oihw                       # (O, I, 3, 3)
    w2 = jnp.transpose(w2, (0, 2, 3, 1))                         # (O, 3, 3, I)
    w2 = jnp.pad(w2, ((0, 0), (0, 0), (0, 0), (0, pad_planes - planes)))
    w2 = w2.reshape(planes, 9 * pad_planes).astype(jnp.bfloat16)

    w3 = (s3[:, None] * w3_oihw[:, :, 0, 0]).astype(jnp.bfloat16)  # (cout, planes)

    # ---- batch grouping: Bt images per grid step --------------------------
    if images_per_step is None:
        images_per_step = _pick_images_per_step(N)
    Bt = images_per_step
    assert N % Bt == 0
    grid_n = N // Bt
    L = Bt * HW

    # (N, cin, H, W) -> (grid_n, cin, Bt*HW): one cheap XLA transpose.
    x_g = (x_nchw.reshape(grid_n, Bt, cin, HW)
           .transpose(0, 2, 1, 3)
           .reshape(grid_n, cin, L))

    # Per-tap validity masks for the grouped layout (row AND column validity;
    # identical per image, tiled Bt times).  Tiny, resident in VMEM.
    hh = np.tile(np.repeat(np.arange(H), W), Bt)
    ww = np.tile(np.arange(W), H * Bt)
    masks_np = np.zeros((9, L), np.float32)
    for dh in range(3):
        for dw in range(3):
            valid = ((hh + dh - 1 >= 0) & (hh + dh - 1 < H) &
                     (ww + dw - 1 >= 0) & (ww + dw - 1 < W))
            masks_np[dh * 3 + dw] = valid
    masks = jnp.asarray(masks_np)

    resident2 = lambda n: (0, 0)
    in_specs = [
        pl.BlockSpec((1, cin, L), lambda n: (n, 0, 0)),          # x group
        pl.BlockSpec((pad_planes, cin), resident2),              # w1 (bf16)
        pl.BlockSpec((planes, 9 * pad_planes), resident2),       # w2 packed
        pl.BlockSpec((cout, planes), resident2),                 # w3 (bf16)
        pl.BlockSpec((pad_planes, 1), resident2),                # b1
        pl.BlockSpec((planes, 1), resident2),                    # b2
        pl.BlockSpec((cout, 1), resident2),                      # b3
        pl.BlockSpec((9, L), resident2),                         # tap masks
    ]

    out_g = pl.pallas_call(
        functools.partial(_bottleneck_kernel, W=W),
        out_shape=jax.ShapeDtypeStruct((grid_n, cout, L), jnp.float32),
        grid=(grid_n,),
        in_specs=in_specs,
        out_specs=pl.BlockSpec((1, cout, L), lambda n: (n, 0, 0)),
        compiler_params=pltpu.CompilerParams(
            dimension_semantics=("parallel",),      # shard steps over v7x's 2 TCs
            vmem_limit_bytes=32 * 1024 * 1024),
    )(x_g, w1, w2, w3, b1p, b2[:, None], b3[:, None], masks)

    # Un-group: (grid_n, cout, Bt*HW) -> (N, cout, H, W).
    return (out_g.reshape(grid_n, cout, Bt, HW)
            .transpose(0, 2, 1, 3)
            .reshape(N, cout, H, W))


# --------------------------- pure-JAX reference ----------------------------- #

def _bn_ref(y, gamma, beta, mean, var):
    def bc(v):
        return v[None, :, None, None]
    return (y - bc(mean)) / jnp.sqrt(bc(var) + BN_EPS) * bc(gamma) + bc(beta)


def bottleneck_reference(x, w1_oihw, w2_oihw, w3_oihw, bn1, bn2, bn3):
    dn = ("NCHW", "OIHW", "NCHW")
    y = lax.conv_general_dilated(x, w1_oihw, (1, 1), "VALID",
                                 dimension_numbers=dn)
    y = jnp.maximum(_bn_ref(y, *bn1), 0.0)
    y = lax.conv_general_dilated(y, w2_oihw, (1, 1), [(1, 1), (1, 1)],
                                 dimension_numbers=dn)
    y = jnp.maximum(_bn_ref(y, *bn2), 0.0)
    y = lax.conv_general_dilated(y, w3_oihw, (1, 1), "VALID",
                                 dimension_numbers=dn)
    y = _bn_ref(y, *bn3)
    return jnp.maximum(y + x, 0.0)


# ---------------------------------- main ------------------------------------ #

if __name__ == "__main__":
    # downsample=None => inplanes == planes * expansion, stride == 1.
    inplanes, planes, N, H, W = 16, 4, 4, 16, 16
    expansion = 4

    key = jax.random.PRNGKey(0)
    kx, k1, k2, k3 = jax.random.split(key, 4)

    x = jax.random.normal(kx, (N, inplanes, H, W), dtype=jnp.float32)

    # PyTorch-layout (OIHW) conv weights, deterministic init.
    w1_oihw = 0.1 * jax.random.normal(k1, (planes, inplanes, 1, 1), jnp.float32)
    w2_oihw = 0.1 * jax.random.normal(k2, (planes, planes, 3, 3), jnp.float32)
    w3_oihw = 0.1 * jax.random.normal(k3, (planes * expansion, planes, 1, 1),
                                      jnp.float32)

    def bn_params(c, seed):
        i = jnp.arange(c, dtype=jnp.float32)
        gamma = 1.0 + 0.1 * i
        beta = 0.01 * i - 0.05 * seed
        mean = 0.02 * i
        var = 1.0 + 0.05 * i
        return (gamma, beta, mean, var)

    bn1 = bn_params(planes, 1)
    bn2 = bn_params(planes, 2)
    bn3 = bn_params(planes * expansion, 3)

    out = jax.block_until_ready(
        bottleneck_forward(x, w1_oihw, w2_oihw, w3_oihw, bn1, bn2, bn3))
    ref = jax.block_until_ready(
        bottleneck_reference(x, w1_oihw, w2_oihw, w3_oihw, bn1, bn2, bn3))

    # bf16 MXU operands with f32 accumulation -> loose-ish tolerance.
    np.testing.assert_allclose(np.asarray(out), np.asarray(ref),
                               rtol=5e-2, atol=5e-2)
    print("KERNEL_OK")
</pallas_src>

<mosaic_0001>
module attributes {stable_mosaic.version = 11 : i64} {
  func.func @_bottleneck_kernel(%arg0: i32, %arg1: memref<1x16x512xf32, #tpu.memory_space<vmem>>, %arg2: memref<8x16xbf16, #tpu.memory_space<vmem>>, %arg3: memref<4x72xbf16, #tpu.memory_space<vmem>>, %arg4: memref<16x4xbf16, #tpu.memory_space<vmem>>, %arg5: memref<8x1xf32, #tpu.memory_space<vmem>>, %arg6: memref<4x1xf32, #tpu.memory_space<vmem>>, %arg7: memref<16x1xf32, #tpu.memory_space<vmem>>, %arg8: memref<9x512xf32, #tpu.memory_space<vmem>>, %arg9: memref<1x16x512xf32, #tpu.memory_space<vmem>>) attributes {dimension_semantics = [#tpu.dimension_semantics<parallel>], iteration_bounds = array<i64: 2>, scalar_prefetch = 0 : i64, scratch_operands = 0 : i64, tpu.core_type = #tpu.core_type<tc>, window_params = [{transform_indices = @transform_0, window_bounds = array<i64: 1, 16, 512>}, {pipeline_mode = #tpu.pipeline_mode<synchronous>, transform_indices = @transform_1, window_bounds = array<i64: 8, 16>}, {pipeline_mode = #tpu.pipeline_mode<synchronous>, transform_indices = @transform_2, window_bounds = array<i64: 4, 72>}, {pipeline_mode = #tpu.pipeline_mode<synchronous>, transform_indices = @transform_3, window_bounds = array<i64: 16, 4>}, {pipeline_mode = #tpu.pipeline_mode<synchronous>, transform_indices = @transform_4, window_bounds = array<i64: 8, 1>}, {pipeline_mode = #tpu.pipeline_mode<synchronous>, transform_indices = @transform_5, window_bounds = array<i64: 4, 1>}, {pipeline_mode = #tpu.pipeline_mode<synchronous>, transform_indices = @transform_6, window_bounds = array<i64: 16, 1>}, {pipeline_mode = #tpu.pipeline_mode<synchronous>, transform_indices = @transform_7, window_bounds = array<i64: 9, 512>}, {transform_indices = @transform_8, window_bounds = array<i64: 1, 16, 512>}]} {
    %c0 = arith.constant 0 : index
    %c0_0 = arith.constant 0 : index
    %c0_1 = arith.constant 0 : index
    %0 = vector.load %arg1[%c0, %c0_0, %c0_1] : memref<1x16x512xf32, #tpu.memory_space<vmem>>, vector<1x16x512xf32>
    %1 = vector.shape_cast %0 : vector<1x16x512xf32> to vector<16x512xf32>
    %2 = arith.truncf %1 : vector<16x512xf32> to vector<16x512xbf16>
    %c0_2 = arith.constant 0 : index
    %c0_3 = arith.constant 0 : index
    %3 = vector.load %arg2[%c0_2, %c0_3] : memref<8x16xbf16, #tpu.memory_space<vmem>>, vector<8x16xbf16>
    %cst = arith.constant dense<0.000000e+00> : vector<8x512xf32>
    %4 = tpu.matmul %3, %2, %cst {dimension_numbers = #tpu.dot_dimension_numbers<[1], [0], [0], [1], [0, 0, 1, 1], [], []>} : vector<8x16xbf16>, vector<16x512xbf16>, vector<8x512xf32> -> vector<8x512xf32>
    %c0_4 = arith.constant 0 : index
    %c0_5 = arith.constant 0 : index
    %5 = vector.load %arg5[%c0_4, %c0_5] : memref<8x1xf32, #tpu.memory_space<vmem>>, vector<8x1xf32>
    %6 = vector.broadcast %5 : vector<8x1xf32> to vector<8x512xf32>
    %7 = arith.addf %4, %6 : vector<8x512xf32>
    %cst_6 = arith.constant 0.000000e+00 : f32
    %8 = vector.broadcast %cst_6 : f32 to vector<8x512xf32>
    %9 = arith.maximumf %7, %8 : vector<8x512xf32>
    %c0_7 = arith.constant 0 : index
    %c0_8 = arith.constant 0 : index
    %10 = vector.load %arg8[%c0_7, %c0_8] : memref<9x512xf32, #tpu.memory_space<vmem>>, vector<9x512xf32>
    %cst_9 = arith.constant 0.000000e+00 : f32
    %11 = vector.broadcast %cst_9 : f32 to vector<8x17xf32>
    %12 = vector.extract_strided_slice %9 {offsets = [0, 0], sizes = [8, 495], strides = [1, 1]} : vector<8x512xf32> to vector<8x495xf32>
    %13 = tpu.concatenate %11, %12 in 1 : vector<8x17xf32>, vector<8x495xf32> -> vector<8x512xf32>
    %14 = vector.extract_strided_slice %10 {offsets = [0, 0], sizes = [1, 512], strides = [1, 1]} : vector<9x512xf32> to vector<1x512xf32>
    %15 = vector.broadcast %14 : vector<1x512xf32> to vector<8x512xf32>
    %16 = arith.mulf %13, %15 : vector<8x512xf32>
    %cst_10 = arith.constant 0.000000e+00 : f32
    %17 = vector.broadcast %cst_10 : f32 to vector<8x16xf32>
    %18 = vector.extract_strided_slice %9 {offsets = [0, 0], sizes = [8, 496], strides = [1, 1]} : vector<8x512xf32> to vector<8x496xf32>
    %19 = tpu.concatenate %17, %18 in 1 : vector<8x16xf32>, vector<8x496xf32> -> vector<8x512xf32>
    %20 = vector.extract_strided_slice %10 {offsets = [1, 0], sizes = [1, 512], strides = [1, 1]} : vector<9x512xf32> to vector<1x512xf32>
    %21 = vector.broadcast %20 : vector<1x512xf32> to vector<8x512xf32>
    %22 = arith.mulf %19, %21 : vector<8x512xf32>
    %cst_11 = arith.constant 0.000000e+00 : f32
    %23 = vector.broadcast %cst_11 : f32 to vector<8x15xf32>
    %24 = vector.extract_strided_slice %9 {offsets = [0, 0], sizes = [8, 497], strides = [1, 1]} : vector<8x512xf32> to vector<8x497xf32>
    %25 = tpu.concatenate %23, %24 in 1 : vector<8x15xf32>, vector<8x497xf32> -> vector<8x512xf32>
    %26 = vector.extract_strided_slice %10 {offsets = [2, 0], sizes = [1, 512], strides = [1, 1]} : vector<9x512xf32> to vector<1x512xf32>
    %27 = vector.broadcast %26 : vector<1x512xf32> to vector<8x512xf32>
    %28 = arith.mulf %25, %27 : vector<8x512xf32>
    %cst_12 = arith.constant 0.000000e+00 : f32
    %29 = vector.broadcast %cst_12 : f32 to vector<8x1xf32>
    %30 = vector.extract_strided_slice %9 {offsets = [0, 0], sizes = [8, 511], strides = [1, 1]} : vector<8x512xf32> to vector<8x511xf32>
    %31 = tpu.concatenate %29, %30 in 1 : vector<8x1xf32>, vector<8x511xf32> -> vector<8x512xf32>
    %32 = vector.extract_strided_slice %10 {offsets = [3, 0], sizes = [1, 512], strides = [1, 1]} : vector<9x512xf32> to vector<1x512xf32>
    %33 = vector.broadcast %32 : vector<1x512xf32> to vector<8x512xf32>
    %34 = arith.mulf %31, %33 : vector<8x512xf32>
    %cst_13 = arith.constant 0.000000e+00 : f32
    %35 = vector.broadcast %cst_13 : f32 to vector<8x1xf32>
    %36 = vector.extract_strided_slice %9 {offsets = [0, 1], sizes = [8, 511], strides = [1, 1]} : vector<8x512xf32> to vector<8x511xf32>
    %37 = tpu.concatenate %36, %35 in 1 : vector<8x511xf32>, vector<8x1xf32> -> vector<8x512xf32>
    %38 = vector.extract_strided_slice %10 {offsets = [5, 0], sizes = [1, 512], strides = [1, 1]} : vector<9x512xf32> to vector<1x512xf32>
    %39 = vector.broadcast %38 : vector<1x512xf32> to vector<8x512xf32>
    %40 = arith.mulf %37, %39 : vector<8x512xf32>
    %cst_14 = arith.constant 0.000000e+00 : f32
    %41 = vector.broadcast %cst_14 : f32 to vector<8x15xf32>
    %42 = vector.extract_strided_slice %9 {offsets = [0, 15], sizes = [8, 497], strides = [1, 1]} : vector<8x512xf32> to vector<8x497xf32>
    %43 = tpu.concatenate %42, %41 in 1 : vector<8x497xf32>, vector<8x15xf32> -> vector<8x512xf32>
    %44 = vector.extract_strided_slice %10 {offsets = [6, 0], sizes = [1, 512], strides = [1, 1]} : vector<9x512xf32> to vector<1x512xf32>
    %45 = vector.broadcast %44 : vector<1x512xf32> to vector<8x512xf32>
    %46 = arith.mulf %43, %45 : vector<8x512xf32>
    %cst_15 = arith.constant 0.000000e+00 : f32
    %47 = vector.broadcast %cst_15 : f32 to vector<8x16xf32>
    %48 = vector.extract_strided_slice %9 {offsets = [0, 16], sizes = [8, 496], strides = [1, 1]} : vector<8x512xf32> to vector<8x496xf32>
    %49 = tpu.concatenate %48, %47 in 1 : vector<8x496xf32>, vector<8x16xf32> -> vector<8x512xf32>
    %50 = vector.extract_strided_slice %10 {offsets = [7, 0], sizes = [1, 512], strides = [1, 1]} : vector<9x512xf32> to vector<1x512xf32>
    %51 = vector.broadcast %50 : vector<1x512xf32> to vector<8x512xf32>
    %52 = arith.mulf %49, %51 : vector<8x512xf32>
    %cst_16 = arith.constant 0.000000e+00 : f32
    %53 = vector.broadcast %cst_16 : f32 to vector<8x17xf32>
    %54 = vector.extract_strided_slice %9 {offsets = [0, 17], sizes = [8, 495], strides = [1, 1]} : vector<8x512xf32> to vector<8x495xf32>
    %55 = tpu.concatenate %54, %53 in 1 : vector<8x495xf32>, vector<8x17xf32> -> vector<8x512xf32>
    %56 = vector.extract_strided_slice %10 {offsets = [8, 0], sizes = [1, 512], strides = [1, 1]} : vector<9x512xf32> to vector<1x512xf32>
    %57 = vector.broadcast %56 : vector<1x512xf32> to vector<8x512xf32>
    %58 = arith.mulf %55, %57 : vector<8x512xf32>
    %59 = tpu.concatenate %16, %22, %28, %34, %9, %40, %46, %52, %58 in 0 : vector<8x512xf32>, vector<8x512xf32>, vector<8x512xf32>, vector<8x512xf32>, vector<8x512xf32>, vector<8x512xf32>, vector<8x512xf32>, vector<8x512xf32>, vector<8x512xf32> -> vector<72x512xf32>
    %60 = arith.truncf %59 : vector<72x512xf32> to vector<72x512xbf16>
    %c0_17 = arith.constant 0 : index
    %c0_18 = arith.constant 0 : index
    %61 = vector.load %arg3[%c0_17, %c0_18] : memref<4x72xbf16, #tpu.memory_space<vmem>>, vector<4x72xbf16>
    %cst_19 = arith.constant dense<0.000000e+00> : vector<4x512xf32>
    %62 = tpu.matmul %61, %60, %cst_19 {dimension_numbers = #tpu.dot_dimension_numbers<[1], [0], [0], [1], [0, 0, 1, 1], [], []>} : vector<4x72xbf16>, vector<72x512xbf16>, vector<4x512xf32> -> vector<4x512xf32>
    %c0_20 = arith.constant 0 : index
    %c0_21 = arith.constant 0 : index
    %63 = vector.load %arg6[%c0_20, %c0_21] : memref<4x1xf32, #tpu.memory_space<vmem>>, vector<4x1xf32>
    %64 = vector.broadcast %63 : vector<4x1xf32> to vector<4x512xf32>
    %65 = arith.addf %62, %64 : vector<4x512xf32>
    %cst_22 = arith.constant 0.000000e+00 : f32
    %66 = vector.broadcast %cst_22 : f32 to vector<4x512xf32>
    %67 = arith.maximumf %65, %66 : vector<4x512xf32>
    %68 = arith.truncf %67 : vector<4x512xf32> to vector<4x512xbf16>
    %c0_23 = arith.constant 0 : index
    %c0_24 = arith.constant 0 : index
    %69 = vector.load %arg4[%c0_23, %c0_24] : memref<16x4xbf16, #tpu.memory_space<vmem>>, vector<16x4xbf16>
    %cst_25 = arith.constant dense<0.000000e+00> : vector<16x512xf32>
    %70 = tpu.matmul %69, %68, %cst_25 {dimension_numbers = #tpu.dot_dimension_numbers<[1], [0], [0], [1], [0, 0, 1, 1], [], []>} : vector<16x4xbf16>, vector<4x512xbf16>, vector<16x512xf32> -> vector<16x512xf32>
    %c0_26 = arith.constant 0 : index
    %c0_27 = arith.constant 0 : index
    %71 = vector.load %arg7[%c0_26, %c0_27] : memref<16x1xf32, #tpu.memory_space<vmem>>, vector<16x1xf32>
    %72 = vector.broadcast %71 : vector<16x1xf32> to vector<16x512xf32>
    %73 = arith.addf %70, %72 : vector<16x512xf32>
    %c0_28 = arith.constant 0 : index
    %c0_29 = arith.constant 0 : index
    %c0_30 = arith.constant 0 : index
    %74 = vector.load %arg1[%c0_28, %c0_29, %c0_30] : memref<1x16x512xf32, #tpu.memory_space<vmem>>, vector<1x16x512xf32>
    %75 = vector.shape_cast %74 : vector<1x16x512xf32> to vector<16x512xf32>
    %76 = arith.addf %73, %75 : vector<16x512xf32>
    %cst_31 = arith.constant 0.000000e+00 : f32
    %77 = vector.broadcast %cst_31 : f32 to vector<16x512xf32>
    %78 = arith.maximumf %76, %77 : vector<16x512xf32>
    %c0_32 = arith.constant 0 : index
    %c0_33 = arith.constant 0 : index
    %c0_34 = arith.constant 0 : index
    %79 = vector.load %arg9[%c0_32, %c0_33, %c0_34] : memref<1x16x512xf32, #tpu.memory_space<vmem>>, vector<1x16x512xf32>
    %80 = vector.shape_cast %79 : vector<1x16x512xf32> to vector<16x512xf32>
    %81 = vector.shape_cast %78 : vector<16x512xf32> to vector<1x16x512xf32>
    tpu.vector_store %arg9[%c0_32, %c0_33, %c0_34], %81 {strides = array<i32>} : memref<1x16x512xf32, #tpu.memory_space<vmem>>, vector<1x16x512xf32>,
    return
  }
  func.func @transform_0(%arg0: i32) -> (i32, i32, i32) {
    %c0_i32 = arith.constant 0 : i32
    %c0_i32_0 = arith.constant 0 : i32
    %c0_i32_1 = arith.constant 0 : i32
    return %arg0, %c0_i32, %c0_i32_0 : i32, i32, i32
  }
  func.func @transform_1(%arg0: i32) -> (i32, i32) {
    %c0_i32 = arith.constant 0 : i32
    %c0_i32_0 = arith.constant 0 : i32
    %c0_i32_1 = arith.constant 0 : i32
    return %c0_i32, %c0_i32_0 : i32, i32
  }
  func.func @transform_2(%arg0: i32) -> (i32, i32) {
    %c0_i32 = arith.constant 0 : i32
    %c0_i32_0 = arith.constant 0 : i32
    %c0_i32_1 = arith.constant 0 : i32
    return %c0_i32, %c0_i32_0 : i32, i32
  }
  func.func @transform_3(%arg0: i32) -> (i32, i32) {
    %c0_i32 = arith.constant 0 : i32
    %c0_i32_0 = arith.constant 0 : i32
    %c0_i32_1 = arith.constant 0 : i32
    return %c0_i32, %c0_i32_0 : i32, i32
  }
  func.func @transform_4(%arg0: i32) -> (i32, i32) {
    %c0_i32 = arith.constant 0 : i32
    %c0_i32_0 = arith.constant 0 : i32
    %c0_i32_1 = arith.constant 0 : i32
    return %c0_i32, %c0_i32_0 : i32, i32
  }
  func.func @transform_5(%arg0: i32) -> (i32, i32) {
    %c0_i32 = arith.constant 0 : i32
    %c0_i32_0 = arith.constant 0 : i32
    %c0_i32_1 = arith.constant 0 : i32
    return %c0_i32, %c0_i32_0 : i32, i32
  }
  func.func @transform_6(%arg0: i32) -> (i32, i32) {
    %c0_i32 = arith.constant 0 : i32
    %c0_i32_0 = arith.constant 0 : i32
    %c0_i32_1 = arith.constant 0 : i32
    return %c0_i32, %c0_i32_0 : i32, i32
  }
  func.func @transform_7(%arg0: i32) -> (i32, i32) {
    %c0_i32 = arith.constant 0 : i32
    %c0_i32_0 = arith.constant 0 : i32
    %c0_i32_1 = arith.constant 0 : i32
    return %c0_i32, %c0_i32_0 : i32, i32
  }
  func.func @transform_8(%arg0: i32) -> (i32, i32, i32) {
    %c0_i32 = arith.constant 0 : i32
    %c0_i32_0 = arith.constant 0 : i32
    %c0_i32_1 = arith.constant 0 : i32
    return %arg0, %c0_i32, %c0_i32_0 : i32, i32, i32
  }
}

</mosaic_0001>

<llo_original>
// kernel: tpu_custom_call.1
$region0: #{tpu_custom_call.1}
  #allocation0 [shape = 'u32[]', space=smem, size = 0x4, offset = 0x4, fixed_abs, tag = 'smem constant byte address 0x4 - core index']
  #allocation1 [shape = 'u32[144,128]{1,0:T(1,128)}', space=vmem, size = 0x12000, scoped, tag = 'internal scratch']
  %s0 = inlined_call_operand.hbm [shape: f32[2,16,512], index: 0, kind: input, shape index: {}]
  %s1 = inlined_call_operand.hbm [shape: bf16[8,16], index: 1, kind: input, shape index: {}]
  %s2 = inlined_call_operand.vmem [shape: bf16[4,72], index: 2, kind: input, shape index: {}]
  %s3 = inlined_call_operand.vmem [shape: bf16[16,4], index: 3, kind: input, shape index: {}]
  %s4 = inlined_call_operand.vmem [shape: f32[8,1], index: 4, kind: input, shape index: {}]
  %s5 = inlined_call_operand.vmem [shape: f32[4,1], index: 5, kind: input, shape index: {}]
  %s6 = inlined_call_operand.vmem [shape: f32[16,1], index: 6, kind: input, shape index: {}]
  %s7 = inlined_call_operand.vmem [shape: f32[9,512], index: 7, kind: input, shape index: {}]
  %s8 = inlined_call_operand.hbm [shape: f32[2,16,512], index: 8, kind: output, shape index: {}]
  %s9 = sld [smem:[#allocation0]]
  $region73: #{tpu_custom_call.1} parent=0
    _
  %s11 = ssub.s32 1, %s9
  %s12 = scalar_select 0, %s11, %s9
  $region1: #{tpu_custom_call.1} parent=0
    #allocation2 [shape = 'u8[65536]{0}', space=vmem, size = 0x10000, scoped, tag = 'input window, operand 0']
    #allocation3 [shape = 's32[2]{0}', space=sflag, size = 0x8, scoped, tag = 'scoped memory for tpu_custom_call.1']
    #allocation4 [shape = 's32[2]{0}', space=sflag, size = 0x8, scoped, tag = 'scoped memory for tpu_custom_call.1']
    #allocation5 [shape = 'u8[2048]{0}', space=vmem, size = 0x800, scoped, tag = 'input window, operand 1, single buffered']
    #allocation6 [shape = 's32[1]{0}', space=sflag, size = 0x4, scoped, tag = 'scoped memory for tpu_custom_call.1']
    #allocation7 [shape = 'u8[65536]{0}', space=vmem, size = 0x10000, scoped, tag = 'output window, operand 0']
    %13 = vsyncpa [#allocation3], 0
    %s14 = scalar_lea.sflag [#allocation3], 1
    %15 = vsyncpa %s14, 0
    %16 = vsyncpa [#allocation6], 0
    %17 = vsyncpa [#allocation4], 0
    %s18 = scalar_lea.sflag [#allocation4], 1
    %19 = vsyncpa %s18, 0
    loop: start=0, step=1, limit=4
    $region2: #{tpu_custom_call.1} parent=1 // loop_pre_header
      _
    $region3: #{tpu_custom_call.1} parent=1 // loop_header
      %s21 = sphi 0, %s25
      %p22 = scmp.ge.s32.totalorder %s21, 4
      %s31 = sphi 0, %s33
      %s34 = sphi 0, %s31
      %s35 = sphi 0, %s34
      %s51 = sphi 0, %s35
      %s55 = sphi 0, %s55
      %s57 = sphi 0, %s55
      %s58 = sphi 0, %s57
      %s72 = sphi 0, %s58
      %s76 = sphi 0, %s76
      %s78 = sphi 0, %s76
      %s79 = sphi 0, %s78
      %s93 = sphi 0, %s79
      %s97 = sphi 0, %s97
      %s99 = sphi 0, %s97
      %s100 = sphi 0, %s99
      %s114 = sphi 0, %s100
      %s118 = sphi 0, %s118
      %s120 = sphi 0, %s118
      %s121 = sphi 0, %s120
      %s135 = sphi 0, %s121
      %s139 = sphi 0, %s139
      %s141 = sphi 0, %s139
      %s142 = sphi 0, %s141
      %s156 = sphi 0, %s142
      %s160 = sphi 0, %s160
      %s162 = sphi 0, %s160
      %s163 = sphi 0, %s162
      %s177 = sphi 0, %s163
      %s181 = sphi 0, %s181
      %s183 = sphi 0, %s181
      %s184 = sphi 0, %s183
      %s198 = sphi 0, %s184
      %s204 = sphi 0, %s206
      %s207 = sphi 0, %s204
      %s208 = sphi 0, %s207
      %s224 = sphi 0, %s208
    $region4: #{tpu_custom_call.1} parent=1 // loop_header_branch
      %24 = sbr.rel (%p22) target = $region8
    $region5: #{tpu_custom_call.1} parent=1 // loop_body
      %s26 = ssub.s32 %s21, 1
      %s27 = ssub.s32 %s21, 2
      %s28 = sadd.s32 %s21, 1
      %s29 = ssub.s32 %s21, %s28
      %p30 = scmp.eq.s32.totalorder %s29, 0
      %s32 = sadd.s32 %s31, 1
      %s33 = scalar_select %p30, %s31, %s32
      %p36 = pneg %p30
      %p37 = scmp.eq.s32.totalorder %s21, 1
      %p38 = por %p36, %p37
      %p39 = scmp.ne.s32.totalorder %s31, %s34
      %p40 = scmp.eq.s32.totalorder %s21, 0
      %p41 = por %p39, %p40
      %p42 = scmp.ne.s32.totalorder %s31, %s34
      %p43 = scmp.eq.s32.totalorder %s26, 1
      %p44 = por %p42, %p43
      %p45 = scmp.ne.s32.totalorder %s34, %s35
      %p46 = scmp.eq.s32.totalorder %s26, 0
      %p47 = por %p45, %p46
      %p48 = scmp.ne.s32.totalorder %s34, %s35
      %p49 = scmp.eq.s32.totalorder %s27, 1
      %p50 = por %p48, %p49
      %p52 = scmp.ne.s32.totalorder %s35, %s51
      %p53 = scmp.eq.s32.totalorder %s27, 0
      %p54 = por %p52, %p53
      %s56 = sadd.s32 %s55, 1
      %p59 = scmp.eq.s32.totalorder %s21, 1
      %p60 = scmp.ne.s32.totalorder %s55, %s57
      %p61 = scmp.eq.s32.totalorder %s21, 0
      %p62 = por %p60, %p61
      %p63 = scmp.ne.s32.totalorder %s55, %s57
      %p64 = scmp.eq.s32.totalorder %s26, 1
      %p65 = por %p63, %p64
      %p66 = scmp.ne.s32.totalorder %s57, %s58
      %p67 = scmp.eq.s32.totalorder %s26, 0
      %p68 = por %p66, %p67
      %p69 = scmp.ne.s32.totalorder %s57, %s58
      %p70 = scmp.eq.s32.totalorder %s27, 1
      %p71 = por %p69, %p70
      %p73 = scmp.ne.s32.totalorder %s58, %s72
      %p74 = scmp.eq.s32.totalorder %s27, 0
      %p75 = por %p73, %p74
      %s77 = sadd.s32 %s76, 1
      %p80 = scmp.eq.s32.totalorder %s21, 1
      %p81 = scmp.ne.s32.totalorder %s76, %s78
      %p82 = scmp.eq.s32.totalorder %s21, 0
      %p83 = por %p81, %p82
      %p84 = scmp.ne.s32.totalorder %s76, %s78
      %p85 = scmp.eq.s32.totalorder %s26, 1
      %p86 = por %p84, %p85
      %p87 = scmp.ne.s32.totalorder %s78, %s79
      %p88 = scmp.eq.s32.totalorder %s26, 0
      %p89 = por %p87, %p88
      %p90 = scmp.ne.s32.totalorder %s78, %s79
      %p91 = scmp.eq.s32.totalorder %s27, 1
      %p92 = por %p90, %p91
      %p94 = scmp.ne.s32.totalorder %s79, %s93
      %p95 = scmp.eq.s32.totalorder %s27, 0
      %p96 = por %p94, %p95
      %s98 = sadd.s32 %s97, 1
      %p101 = scmp.eq.s32.totalorder %s21, 1
      %p102 = scmp.ne.s32.totalorder %s97, %s99
      %p103 = scmp.eq.s32.totalorder %s21, 0
      %p104 = por %p102, %p103
      %p105 = scmp.ne.s32.totalorder %s97, %s99
      %p106 = scmp.eq.s32.totalorder %s26, 1
      %p107 = por %p105, %p106
      %p108 = scmp.ne.s32.totalorder %s99, %s100
      %p109 = scmp.eq.s32.totalorder %s26, 0
      %p110 = por %p108, %p109
      %p111 = scmp.ne.s32.totalorder %s99, %s100
      %p112 = scmp.eq.s32.totalorder %s27, 1
      %p113 = por %p111, %p112
      %p115 = scmp.ne.s32.totalorder %s100, %s114
      %p116 = scmp.eq.s32.totalorder %s27, 0
      %p117 = por %p115, %p116
      %s119 = sadd.s32 %s118, 1
      %p122 = scmp.eq.s32.totalorder %s21, 1
      %p123 = scmp.ne.s32.totalorder %s118, %s120
      %p124 = scmp.eq.s32.totalorder %s21, 0
      %p125 = por %p123, %p124
      %p126 = scmp.ne.s32.totalorder %s118, %s120
      %p127 = scmp.eq.s32.totalorder %s26, 1
      %p128 = por %p126, %p127
      %p129 = scmp.ne.s32.totalorder %s120, %s121
      %p130 = scmp.eq.s32.totalorder %s26, 0
      %p131 = por %p129, %p130
      %p132 = scmp.ne.s32.totalorder %s120, %s121
      %p133 = scmp.eq.s32.totalorder %s27, 1
      %p134 = por %p132, %p133
      %p136 = scmp.ne.s32.totalorder %s121, %s135
      %p137 = scmp.eq.s32.totalorder %s27, 0
      %p138 = por %p136, %p137
      %s140 = sadd.s32 %s139, 1
      %p143 = scmp.eq.s32.totalorder %s21, 1
      %p144 = scmp.ne.s32.totalorder %s139, %s141
      %p145 = scmp.eq.s32.totalorder %s21, 0
      %p146 = por %p144, %p145
      %p147 = scmp.ne.s32.totalorder %s139, %s141
      %p148 = scmp.eq.s32.totalorder %s26, 1
      %p149 = por %p147, %p148
      %p150 = scmp.ne.s32.totalorder %s141, %s142
      %p151 = scmp.eq.s32.totalorder %s26, 0
      %p152 = por %p150, %p151
      %p153 = scmp.ne.s32.totalorder %s141, %s142
      %p154 = scmp.eq.s32.totalorder %s27, 1
      %p155 = por %p153, %p154
      %p157 = scmp.ne.s32.totalorder %s142, %s156
      %p158 = scmp.eq.s32.totalorder %s27, 0
      %p159 = por %p157, %p158
      %s161 = sadd.s32 %s160, 1
      %p164 = scmp.eq.s32.totalorder %s21, 1
      %p165 = scmp.ne.s32.totalorder %s160, %s162
      %p166 = scmp.eq.s32.totalorder %s21, 0
      %p167 = por %p165, %p166
      %p168 = scmp.ne.s32.totalorder %s160, %s162
      %p169 = scmp.eq.s32.totalorder %s26, 1
      %p170 = por %p168, %p169
      %p171 = scmp.ne.s32.totalorder %s162, %s163
      %p172 = scmp.eq.s32.totalorder %s26, 0
      %p173 = por %p171, %p172
      %p174 = scmp.ne.s32.totalorder %s162, %s163
      %p175 = scmp.eq.s32.totalorder %s27, 1
      %p176 = por %p174, %p175
      %p178 = scmp.ne.s32.totalorder %s163, %s177
      %p179 = scmp.eq.s32.totalorder %s27, 0
      %p180 = por %p178, %p179
      %s182 = sadd.s32 %s181, 1
      %p185 = scmp.eq.s32.totalorder %s21, 1
      %p186 = scmp.ne.s32.totalorder %s181, %s183
      %p187 = scmp.eq.s32.totalorder %s21, 0
      %p188 = por %p186, %p187
      %p189 = scmp.ne.s32.totalorder %s181, %s183
      %p190 = scmp.eq.s32.totalorder %s26, 1
      %p191 = por %p189, %p190
      %p192 = scmp.ne.s32.totalorder %s183, %s184
      %p193 = scmp.eq.s32.totalorder %s26, 0
      %p194 = por %p192, %p193
      %p195 = scmp.ne.s32.totalorder %s183, %s184
      %p196 = scmp.eq.s32.totalorder %s27, 1
      %p197 = por %p195, %p196
      %p199 = scmp.ne.s32.totalorder %s184, %s198
      %p200 = scmp.eq.s32.totalorder %s27, 0
      %p201 = por %p199, %p200
      %s202 = ssub.s32 %s21, %s28
      %p203 = scmp.eq.s32.totalorder %s202, 0
      %s205 = sadd.s32 %s204, 1
      %s206 = scalar_select %p203, %s204, %s205
      %p209 = pneg %p203
      %p210 = scmp.eq.s32.totalorder %s21, 1
      %p211 = por %p209, %p210
      %p212 = scmp.ne.s32.totalorder %s204, %s207
      %p213 = scmp.eq.s32.totalorder %s21, 0
      %p214 = por %p212, %p213
      %p215 = scmp.ne.s32.totalorder %s204, %s207
      %p216 = scmp.eq.s32.totalorder %s26, 1
      %p217 = por %p215, %p216
      %p218 = scmp.ne.s32.totalorder %s207, %s208
      %p219 = scmp.eq.s32.totalorder %s26, 0
      %p220 = por %p218, %p219
      %p221 = scmp.ne.s32.totalorder %s207, %s208
      %p222 = scmp.eq.s32.totalorder %s27, 1
      %p223 = por %p221, %p222
      %p225 = scmp.ne.s32.totalorder %s208, %s224
      %p226 = scmp.eq.s32.totalorder %s27, 0
      %p227 = por %p225, %p226
      %p228 = scmp.le.s32.totalorder 1, %s21
      %p229 = scmp.lt.s32.totalorder %s21, 3
      %p230 = pnand %p228, %p229
      %p231 = pneg %p230
      // Predicated region
      $region9: #{tpu_custom_call.1} parent=5 // pred_check
        _
      $region10: #{tpu_custom_call.1} parent=5 // pred_check_branch
        %233 = sbr.rel (%p230) target = $region12
      $region11: #{tpu_custom_call.1} parent=5 // pred_region
        %s234 = ssub.s32 %s21, 1
        // Predicated region
        $region13: #{tpu_custom_call.1} parent=11 // pred_check
          %p235 = pneg %p68
        $region14: #{tpu_custom_call.1} parent=11 // pred_check_branch
          %237 = sbr.rel (%p235) target = $region16
        $region15: #{tpu_custom_call.1} parent=11 // pred_region
          %s239 = ssub.s32 64, 64
          %240 = vsyncadd [#allocation6], %s239
          %s242 = sshll.u32 [#allocation5], 4
          %s243 = int_to_ptr.vmem [resolvable:$true] %s242
          %245 = dma.hbm_to_vmem [thread:$0]  %s1, 64, %s243, [#allocation6]
        $region16: #{tpu_custom_call.1} parent=11 // pred_fallthru
          _
        // Predicated region
        $region17: #{tpu_custom_call.1} parent=11 // pred_check
          %p246 = pneg %p89
        $region18: #{tpu_custom_call.1} parent=11 // pred_check_branch
          %248 = sbr.rel (%p246) target = $region20
        $region19: #{tpu_custom_call.1} parent=11 // pred_region
          _
        $region20: #{tpu_custom_call.1} parent=11 // pred_fallthru
          _
        // Predicated region
        $region21: #{tpu_custom_call.1} parent=11 // pred_check
          %p249 = pneg %p110
        $region22: #{tpu_custom_call.1} parent=11 // pred_check_branch
          %251 = sbr.rel (%p249) target = $region24
        $region23: #{tpu_custom_call.1} parent=11 // pred_region
          _
        $region24: #{tpu_custom_call.1} parent=11 // pred_fallthru
          _
        // Predicated region
        $region25: #{tpu_custom_call.1} parent=11 // pred_check
          %p252 = pneg %p131
        $region26: #{tpu_custom_call.1} parent=11 // pred_check_branch
          %254 = sbr.rel (%p252) target = $region28
        $region27: #{tpu_custom_call.1} parent=11 // pred_region
          _
        $region28: #{tpu_custom_call.1} parent=11 // pred_fallthru
          _
        // Predicated region
        $region29: #{tpu_custom_call.1} parent=11 // pred_check
          %p255 = pneg %p152
        $region30: #{tpu_custom_call.1} parent=11 // pred_check_branch
          %257 = sbr.rel (%p255) target = $region32
        $region31: #{tpu_custom_call.1} parent=11 // pred_region
          _
        $region32: #{tpu_custom_call.1} parent=11 // pred_fallthru
          _
        // Predicated region
        $region33: #{tpu_custom_call.1} parent=11 // pred_check
          %p258 = pneg %p173
        $region34: #{tpu_custom_call.1} parent=11 // pred_check_branch
          %260 = sbr.rel (%p258) target = $region36
        $region35: #{tpu_custom_call.1} parent=11 // pred_region
          _
        $region36: #{tpu_custom_call.1} parent=11 // pred_fallthru
          _
        // Predicated region
        $region37: #{tpu_custom_call.1} parent=11 // pred_check
          %p261 = pneg %p194
        $region38: #{tpu_custom_call.1} parent=11 // pred_check_branch
          %263 = sbr.rel (%p261) target = $region40
        $region39: #{tpu_custom_call.1} parent=11 // pred_region
          _
        $region40: #{tpu_custom_call.1} parent=11 // pred_fallthru
          _
      $region12: #{tpu_custom_call.1} parent=5 // pred_fallthru
        _
      %p264 = scmp.lt.s32.totalorder %s21, 2
      // Predicated region
      $region41: #{tpu_custom_call.1} parent=5 // pred_check
        %p265 = pneg %p264
      $region42: #{tpu_custom_call.1} parent=5 // pred_check_branch
        %267 = sbr.rel (%p265) target = $region44
      $region43: #{tpu_custom_call.1} parent=5 // pred_region
        // Predicated region
        $region45: #{tpu_custom_call.1} parent=43 // pred_check
          %p268 = pneg %p41
        $region46: #{tpu_custom_call.1} parent=43 // pred_check_branch
          %270 = sbr.rel (%p268) target = $region48
        $region47: #{tpu_custom_call.1} parent=43 // pred_region
          %s271 = sand.u32 %s31, 1
          %s272 = scalar_lea.sflag [#allocation3], %s271
          %s273 = sand.u32 %s31, 1
          %s274 = smul.addr %s273, 64
          %s275 = scalar_lea.vmem [#allocation2], %s274
          %s277 = ssub.s32 1024, 1024
          %278 = vsyncadd %s272, %s277
          %s279 = smul.addr %s21, 8
          %s280 = smul.addr %s279, 128
          %s281 = scalar_lea.hbm %s0, %s280
          %s282 = sshll.u32 %s275, 4
          %s283 = int_to_ptr.vmem [resolvable:$true] %s282
          %288 = dma.hbm_to_vmem [thread:$0]  %s281, 1024, %s283, %s272, 512, 512, 32
        $region48: #{tpu_custom_call.1} parent=43 // pred_fallthru
          _
      $region44: #{tpu_custom_call.1} parent=5 // pred_fallthru
        _
      %p289 = scmp.le.s32.totalorder 1, %s21
      %p290 = scmp.lt.s32.totalorder %s21, 3
      %p291 = pnand %p289, %p290
      %p292 = pneg %p291
      // Predicated region
      $region49: #{tpu_custom_call.1} parent=5 // pred_check
        _
      $region50: #{tpu_custom_call.1} parent=5 // pred_check_branch
        %294 = sbr.rel (%p291) target = $region52
      $region51: #{tpu_custom_call.1} parent=5 // pred_region
        %s295 = ssub.s32 %s21, 1
        %s296 = sand.u32 %s34, 1
        %s297 = scalar_lea.sflag [#allocation3], %s296
        %s298 = sand.u32 %s34, 1
        %s299 = smul.addr %s298, 64
        %s300 = scalar_lea.vmem [#allocation2], %s299
        // Predicated region
        $region53: #{tpu_custom_call.1} parent=51 // pred_check
          %p301 = pneg %p47
        $region54: #{tpu_custom_call.1} parent=51 // pred_check_branch
          %303 = sbr.rel (%p301) target = $region56
        $region55: #{tpu_custom_call.1} parent=51 // pred_region
          %304 = dma.done %s297, 1024
        $region56: #{tpu_custom_call.1} parent=51 // pred_fallthru
          _
        // Predicated region
        $region57: #{tpu_custom_call.1} parent=51 // pred_check
          %p305 = pneg %p68
        $region58: #{tpu_custom_call.1} parent=51 // pred_check_branch
          %307 = sbr.rel (%p305) target = $region60
        $region59: #{tpu_custom_call.1} parent=51 // pred_region
          %308 = dma.done [#allocation6], 64
        $region60: #{tpu_custom_call.1} parent=51 // pred_fallthru
          _
        %s309 = sand.u32 %s34, 1
        %s310 = scalar_lea.sflag [#allocation3], %s309
        %s311 = sand.u32 %s34, 1
        %s312 = smul.addr %s311, 64
        %s313 = scalar_lea.vmem [#allocation2], %s312
        %p314 = pneg %p47
        %p315 = pneg %p44
        %p316 = pneg %p68
        %p317 = pneg %p65
        %p318 = pneg %p89
        %p319 = pneg %p86
        %p320 = pneg %p110
        %p321 = pneg %p107
        %p322 = pneg %p131
        %p323 = pneg %p128
        %p324 = pneg %p152
        %p325 = pneg %p149
        %p326 = pneg %p173
        %p327 = pneg %p170
        %p328 = pneg %p194
        %p329 = pneg %p191
        %p330 = pneg %p220
        %p331 = pneg %p217
        %s332 = sand.u32 %s207, 1
        %s333 = scalar_lea.sflag [#allocation4], %s332
        %s334 = sand.u32 %s207, 1
        %s335 = smul.addr %s334, 64
        %s336 = scalar_lea.vmem [#allocation7], %s335
        %v338 = vld [vmem:[%s300] sm:$0xff]
        %v339 = vld [vmem:[%s300 + $0x8] sm:$0xff]
        %v340 = vld [vmem:[%s300 + $0x10] sm:$0xff]
        %v341 = vld [vmem:[%s300 + $0x18] sm:$0xff]
        %v342 = vld [vmem:[%s300 + $0x20] sm:$0xff]
        %v343 = vld [vmem:[%s300 + $0x28] sm:$0xff]
        %v344 = vld [vmem:[%s300 + $0x30] sm:$0xff]
        %v345 = vld [vmem:[%s300 + $0x38] sm:$0xff]
        %v346 = vpack.c.bf16 %v342, %v338
        %v347 = vpack.c.bf16 %v343, %v339
        %v348 = vpack.c.bf16 %v344, %v340
        %v349 = vpack.c.bf16 %v345, %v341
        %v350 = vld [vmem:[#allocation5] sm:$0xf]
        %v351 = vld [vmem:[%s4] sm:$0xff]
        %353 = vset.pattern.permute.xlu0 0
        %354 = vperm.xlu0 %353, %v351
        %v355 = vpop.permute.xlu0 %354
        %vm357 = vcmask 130048
        %v359 = vsel %vm357, %v350, 0
        %361 = vmatprep.subr.bf16.mxu0 %v347
        %362 = vmatpush1.bf16.msra.mxu0 %v346
        %363 = vmatprep.subr.bf16.mxu0 0
        %364 = vmatpush1.bf16.msra.mxu0 0
        %365 = vmatprep.subr.bf16.mxu0 0
        %366 = vmatpush1.bf16.msra.mxu0 0
        %367 = vmatprep.subr.bf16.mxu0 0
        %368 = vmatpush1.bf16.msra.mxu0 0
        %369 = vmatprep.subr.bf16.mxu0 0
        %370 = vmatpush1.bf16.msra.mxu0 0
        %371 = vmatprep.subr.bf16.mxu0 0
        %372 = vmatpush1.bf16.msra.mxu0 0
        %373 = vmatprep.subr.bf16.mxu0 0
        %374 = vmatpush1.bf16.msra.mxu0 0
        %375 = vmatprep.subr.bf16.mxu0 0
        %376 = vmatpush1.bf16.msra.mxu0 0
        %377 = vmatprep.subr.bf16.mxu0 0
        %378 = vmatpush1.bf16.msra.mxu0 0
        %379 = vmatprep.subr.bf16.mxu0 0
        %380 = vmatpush1.bf16.msra.mxu0 0
        %381 = vmatprep.subr.bf16.mxu0 0
        %382 = vmatpush1.bf16.msra.mxu0 0
        %383 = vmatprep.subr.bf16.mxu0 0
        %384 = vmatpush1.bf16.msra.mxu0 0
        %385 = vmatprep.subr.bf16.mxu0 0
        %386 = vmatpush1.bf16.msra.mxu0 0
        %387 = vmatprep.subr.bf16.mxu0 0
        %388 = vmatpush1.bf16.msra.mxu0 0
        %389 = vmatprep.subr.bf16.mxu0 0
        %390 = vmatpush1.bf16.msra.mxu0 0
        %391 = vmatprep.subr.bf16.mxu0 0
        %392 = vmatpush1.bf16.msra.mxu0 0
        %393 = vmatprep.mubr.bf16.mxu0 0
        %394 = vmatmul.mubr.bf16.gmra.mrb[0].mxu0 %v359
        %v395 = vpop.f32.mrb[0].mxu0
        %v396 = vadd.f32 %v355, %v395
        %v397 = vpop.f32.mrb[0].mxu0
        %v398 = vadd.f32 %v355, %v397
        %v399 = vpop.f32.mrb[0].mxu0
        %v400 = vpop.f32.mrb[0].mxu0
        %401 = vdwg.mxu0
        %402 = vmatprep.subr.bf16.mxu0 %v349
        %403 = vmatpush1.bf16.msra.mxu0 %v348
        %404 = vmatprep.subr.bf16.mxu0 0
        %405 = vmatpush1.bf16.msra.mxu0 0
        %406 = vmatprep.subr.bf16.mxu0 0
        %407 = vmatpush1.bf16.msra.mxu0 0
        %408 = vmatprep.subr.bf16.mxu0 0
        %409 = vmatpush1.bf16.msra.mxu0 0
        %410 = vmatprep.subr.bf16.mxu0 0
        %411 = vmatpush1.bf16.msra.mxu0 0
        %412 = vmatprep.subr.bf16.mxu0 0
        %413 = vmatpush1.bf16.msra.mxu0 0
        %414 = vmatprep.subr.bf16.mxu0 0
        %415 = vmatpush1.bf16.msra.mxu0 0
        %416 = vmatprep.subr.bf16.mxu0 0
        %417 = vmatpush1.bf16.msra.mxu0 0
        %418 = vmatprep.subr.bf16.mxu0 0
        %419 = vmatpush1.bf16.msra.mxu0 0
        %420 = vmatprep.subr.bf16.mxu0 0
        %421 = vmatpush1.bf16.msra.mxu0 0
        %422 = vmatprep.subr.bf16.mxu0 0
        %423 = vmatpush1.bf16.msra.mxu0 0
        %424 = vmatprep.subr.bf16.mxu0 0
        %425 = vmatpush1.bf16.msra.mxu0 0
        %426 = vmatprep.subr.bf16.mxu0 0
        %427 = vmatpush1.bf16.msra.mxu0 0
        %428 = vmatprep.subr.bf16.mxu0 0
        %429 = vmatpush1.bf16.msra.mxu0 0
        %430 = vmatprep.subr.bf16.mxu0 0
        %431 = vmatpush1.bf16.msra.mxu0 0
        %432 = vmatprep.subr.bf16.mxu0 0
        %433 = vmatpush1.bf16.msra.mxu0 0
        %434 = vmatprep.mubr.bf16.mxu0 0
        %435 = vmatmul.mubr.bf16.gmra.mrb[0].mxu0 %v359
        %v436 = vpop.f32.mrb[0].mxu0
        %v437 = vadd.f32 %v355, %v436
        %v438 = vpop.f32.mrb[0].mxu0
        %v439 = vadd.f32 %v355, %v438
        %v440 = vpop.f32.mrb[0].mxu0
        %v441 = vpop.f32.mrb[0].mxu0
        %442 = vdwg.mxu0
        %v443 = vmax.f32 %v396, 0.0
        %v444 = vmax.f32 %v398, 0.0
        %v445 = vmax.f32 %v437, 0.0
        %v446 = vmax.f32 %v439, 0.0
        %v447 = vld [vmem:[%s7] sm:$0xff]
        %v448 = vld [vmem:[%s7 + $0x8] sm:$0xff]
        %v449 = vld [vmem:[%s7 + $0x10] sm:$0xff]
        %v450 = vld [vmem:[%s7 + $0x18] sm:$0xff]
        %v451 = vld [vmem:[%s7 + $0x20] sm:$0x1]
        %v452 = vld [vmem:[%s7 + $0x28] sm:$0x1]
        %v453 = vld [vmem:[%s7 + $0x30] sm:$0x1]
        %v454 = vld [vmem:[%s7 + $0x38] sm:$0x1]
        %459 = vrot.lane.b32.xlu0 %v443, 17
        %v460 = vpop.permute.xlu0 %459
        %461 = vrot.lane.b32.xlu0 %v444, 17
        %v462 = vpop.permute.xlu0 %461
        %463 = vrot.lane.b32.xlu0 %v445, 17
        %v464 = vpop.permute.xlu0 %463
        %465 = vrot.lane.b32.xlu0 %v446, 17
        %v466 = vpop.permute.xlu0 %465
        %vm467 = vcmask 138240
        %v468 = vsel %vm467, %v460, %v462
        %v469 = vsel %vm467, %v462, %v464
        %v470 = vsel %vm467, %v464, %v466
        %v475 = vsel %vm467, 0.0, %v460
        %v476 = vlaneseq
        %v477 = vshrl.u32 %v476, 7
        %v478 = vsub.s32 0, %v477
        %v479 = vrot.slane %v447, %v478
        %v480 = vlaneseq
        %v481 = vshrl.u32 %v480, 7
        %v482 = vsub.s32 0, %v481
        %v483 = vrot.slane %v448, %v482
        %v484 = vlaneseq
        %v485 = vshrl.u32 %v484, 7
        %v486 = vsub.s32 0, %v485
        %v487 = vrot.slane %v449, %v486
        %v488 = vlaneseq
        %v489 = vshrl.u32 %v488, 7
        %v490 = vsub.s32 0, %v489
        %v491 = vrot.slane %v450, %v490
        %v492 = vmul.f32 %v475, %v479
        %v493 = vmul.f32 %v468, %v483
        %v494 = vmul.f32 %v469, %v487
        %v495 = vmul.f32 %v470, %v491
        %496 = vrot.lane.b32.xlu0 %v443, 16
        %v497 = vpop.permute.xlu0 %496
        %498 = vrot.lane.b32.xlu0 %v444, 16
        %v499 = vpop.permute.xlu0 %498
        %500 = vrot.lane.b32.xlu0 %v445, 16
        %v501 = vpop.permute.xlu0 %500
        %502 = vrot.lane.b32.xlu0 %v446, 16
        %v503 = vpop.permute.xlu0 %502
        %v504 = vsel %vm357, %v497, %v499
        %v505 = vsel %vm357, %v499, %v501
        %v506 = vsel %vm357, %v501, %v503
        %v511 = vsel %vm357, 0.0, %v497
        %v512 = vlaneseq
        %v513 = vshrl.u32 %v512, 7
        %v514 = vsub.s32 1, %v513
        %v515 = vrot.slane %v447, %v514
        %v516 = vlaneseq
        %v517 = vshrl.u32 %v516, 7
        %v518 = vsub.s32 1, %v517
        %v519 = vrot.slane %v448, %v518
        %v520 = vlaneseq
        %v521 = vshrl.u32 %v520, 7
        %v522 = vsub.s32 1, %v521
        %v523 = vrot.slane %v449, %v522
        %v524 = vlaneseq
        %v525 = vshrl.u32 %v524, 7
        %v526 = vsub.s32 1, %v525
        %v527 = vrot.slane %v450, %v526
        %v528 = vmul.f32 %v511, %v515
        %v529 = vmul.f32 %v504, %v519
        %v530 = vmul.f32 %v505, %v523
        %v531 = vmul.f32 %v506, %v527
        %532 = vrot.lane.b32.xlu0 %v443, 15
        %v533 = vpop.permute.xlu0 %532
        %534 = vrot.lane.b32.xlu0 %v444, 15
        %v535 = vpop.permute.xlu0 %534
        %536 = vrot.lane.b32.xlu0 %v445, 15
        %v537 = vpop.permute.xlu0 %536
        %538 = vrot.lane.b32.xlu0 %v446, 15
        %v539 = vpop.permute.xlu0 %538
        %vm540 = vcmask 121856
        %v541 = vsel %vm540, %v533, %v535
        %v542 = vsel %vm540, %v535, %v537
        %v543 = vsel %vm540, %v537, %v539
        %v548 = vsel %vm540, 0.0, %v533
        %v549 = vlaneseq
        %v550 = vshrl.u32 %v549, 7
        %v551 = vsub.s32 2, %v550
        %v552 = vrot.slane %v447, %v551
        %v553 = vlaneseq
        %v554 = vshrl.u32 %v553, 7
        %v555 = vsub.s32 2, %v554
        %v556 = vrot.slane %v448, %v555
        %v557 = vlaneseq
        %v558 = vshrl.u32 %v557, 7
        %v559 = vsub.s32 2, %v558
        %v560 = vrot.slane %v449, %v559
        %v561 = vlaneseq
        %v562 = vshrl.u32 %v561, 7
        %v563 = vsub.s32 2, %v562
        %v564 = vrot.slane %v450, %v563
        %v565 = vmul.f32 %v548, %v552
        %v566 = vmul.f32 %v541, %v556
        %v567 = vmul.f32 %v542, %v560
        %v568 = vmul.f32 %v543, %v564
        %569 = vrot.lane.b32.xlu0 %v443, 1
        %v570 = vpop.permute.xlu0 %569
        %571 = vrot.lane.b32.xlu0 %v444, 1
        %v572 = vpop.permute.xlu0 %571
        %573 = vrot.lane.b32.xlu0 %v445, 1
        %v574 = vpop.permute.xlu0 %573
        %575 = vrot.lane.b32.xlu0 %v446, 1
        %v576 = vpop.permute.xlu0 %575
        %vm577 = vcmask 7168
        %v578 = vsel %vm577, %v570, %v572
        %v579 = vsel %vm577, %v572, %v574
        %v580 = vsel %vm577, %v574, %v576
        %v585 = vsel %vm577, 0.0, %v570
        %v586 = vlaneseq
        %v587 = vshrl.u32 %v586, 7
        %v588 = vsub.s32 3, %v587
        %v589 = vrot.slane %v447, %v588
        %v590 = vlaneseq
        %v591 = vshrl.u32 %v590, 7
        %v592 = vsub.s32 3, %v591
        %v593 = vrot.slane %v448, %v592
        %v594 = vlaneseq
        %v595 = vshrl.u32 %v594, 7
        %v596 = vsub.s32 3, %v595
        %v597 = vrot.slane %v449, %v596
        %v598 = vlaneseq
        %v599 = vshrl.u32 %v598, 7
        %v600 = vsub.s32 3, %v599
        %v601 = vrot.slane %v450, %v600
        %v602 = vmul.f32 %v585, %v589
        %v603 = vmul.f32 %v578, %v593
        %v604 = vmul.f32 %v579, %v597
        %v605 = vmul.f32 %v580, %v601
        %606 = vrot.lane.b32.xlu0 %v443, 127
        %v607 = vpop.permute.xlu0 %606
        %608 = vrot.lane.b32.xlu0 %v444, 127
        %v609 = vpop.permute.xlu0 %608
        %610 = vrot.lane.b32.xlu0 %v445, 127
        %v611 = vpop.permute.xlu0 %610
        %612 = vrot.lane.b32.xlu0 %v446, 127
        %v613 = vpop.permute.xlu0 %612
        %vm614 = vcmask 1039360
        %v615 = vsel %vm614, %v607, %v609
        %v616 = vsel %vm614, %v609, %v611
        %v617 = vsel %vm614, %v611, %v613
        %v622 = vsel %vm614, %v613, 0.0
        %v623 = vlaneseq
        %v624 = vshrl.u32 %v623, 7
        %v625 = vsub.s32 5, %v624
        %v626 = vrot.slane %v447, %v625
        %v627 = vlaneseq
        %v628 = vshrl.u32 %v627, 7
        %v629 = vsub.s32 5, %v628
        %v630 = vrot.slane %v448, %v629
        %v631 = vlaneseq
        %v632 = vshrl.u32 %v631, 7
        %v633 = vsub.s32 5, %v632
        %v634 = vrot.slane %v449, %v633
        %v635 = vlaneseq
        %v636 = vshrl.u32 %v635, 7
        %v637 = vsub.s32 5, %v636
        %v638 = vrot.slane %v450, %v637
        %v639 = vmul.f32 %v615, %v626
        %v640 = vmul.f32 %v616, %v630
        %v641 = vmul.f32 %v617, %v634
        %v642 = vmul.f32 %v622, %v638
        %643 = vrot.lane.b32.xlu0 %v443, 113
        %v644 = vpop.permute.xlu0 %643
        %645 = vrot.lane.b32.xlu0 %v444, 113
        %v646 = vpop.permute.xlu0 %645
        %647 = vrot.lane.b32.xlu0 %v445, 113
        %v648 = vpop.permute.xlu0 %647
        %649 = vrot.lane.b32.xlu0 %v446, 113
        %v650 = vpop.permute.xlu0 %649
        %vm651 = vcmask 924672
        %v652 = vsel %vm651, %v644, %v646
        %v653 = vsel %vm651, %v646, %v648
        %v654 = vsel %vm651, %v648, %v650
        %v659 = vsel %vm651, %v650, 0.0
        %v660 = vlaneseq
        %v661 = vshrl.u32 %v660, 7
        %v662 = vsub.s32 6, %v661
        %v663 = vrot.slane %v447, %v662
        %v664 = vlaneseq
        %v665 = vshrl.u32 %v664, 7
        %v666 = vsub.s32 6, %v665
        %v667 = vrot.slane %v448, %v666
        %v668 = vlaneseq
        %v669 = vshrl.u32 %v668, 7
        %v670 = vsub.s32 6, %v669
        %v671 = vrot.slane %v449, %v670
        %v672 = vlaneseq
        %v673 = vshrl.u32 %v672, 7
        %v674 = vsub.s32 6, %v673
        %v675 = vrot.slane %v450, %v674
        %v676 = vmul.f32 %v652, %v663
        %v677 = vmul.f32 %v653, %v667
        %v678 = vmul.f32 %v654, %v671
        %v679 = vmul.f32 %v659, %v675
        %680 = vrot.lane.b32.xlu0 %v443, 112
        %v681 = vpop.permute.xlu0 %680
        %682 = vrot.lane.b32.xlu0 %v444, 112
        %v683 = vpop.permute.xlu0 %682
        %684 = vrot.lane.b32.xlu0 %v445, 112
        %v685 = vpop.permute.xlu0 %684
        %686 = vrot.lane.b32.xlu0 %v446, 112
        %v687 = vpop.permute.xlu0 %686
        %vm688 = vcmask 916480
        %v689 = vsel %vm688, %v681, %v683
        %v690 = vsel %vm688, %v683, %v685
        %v691 = vsel %vm688, %v685, %v687
        %v696 = vsel %vm688, %v687, 0.0
        %v697 = vlaneseq
        %v698 = vshrl.u32 %v697, 7
        %v699 = vsub.s32 7, %v698
        %v700 = vrot.slane %v447, %v699
        %v701 = vlaneseq
        %v702 = vshrl.u32 %v701, 7
        %v703 = vsub.s32 7, %v702
        %v704 = vrot.slane %v448, %v703
        %v705 = vlaneseq
        %v706 = vshrl.u32 %v705, 7
        %v707 = vsub.s32 7, %v706
        %v708 = vrot.slane %v449, %v707
        %v709 = vlaneseq
        %v710 = vshrl.u32 %v709, 7
        %v711 = vsub.s32 7, %v710
        %v712 = vrot.slane %v450, %v711
        %v713 = vmul.f32 %v689, %v700
        %v714 = vmul.f32 %v690, %v704
        %v715 = vmul.f32 %v691, %v708
        %v716 = vmul.f32 %v696, %v712
        %717 = vrot.lane.b32.xlu0 %v443, 111
        %v718 = vpop.permute.xlu0 %717
        %719 = vrot.lane.b32.xlu0 %v444, 111
        %v720 = vpop.permute.xlu0 %719
        %721 = vrot.lane.b32.xlu0 %v445, 111
        %v722 = vpop.permute.xlu0 %721
        %723 = vrot.lane.b32.xlu0 %v446, 111
        %v724 = vpop.permute.xlu0 %723
        %vm725 = vcmask 908288
        %v726 = vsel %vm725, %v718, %v720
        %v727 = vsel %vm725, %v720, %v722
        %v728 = vsel %vm725, %v722, %v724
        %v733 = vsel %vm725, %v724, 0.0
        %v734 = vlaneseq
        %v735 = vshrl.u32 %v734, 7
        %v736 = vsub.s32 0, %v735
        %v737 = vrot.slane %v451, %v736
        %v738 = vlaneseq
        %v739 = vshrl.u32 %v738, 7
        %v740 = vsub.s32 0, %v739
        %v741 = vrot.slane %v452, %v740
        %v742 = vlaneseq
        %v743 = vshrl.u32 %v742, 7
        %v744 = vsub.s32 0, %v743
        %v745 = vrot.slane %v453, %v744
        %v746 = vlaneseq
        %v747 = vshrl.u32 %v746, 7
        %v748 = vsub.s32 0, %v747
        %v749 = vrot.slane %v454, %v748
        %v750 = vmul.f32 %v726, %v737
        %v751 = vmul.f32 %v727, %v741
        %v752 = vmul.f32 %v728, %v745
        %v753 = vmul.f32 %v733, %v749
        %v754 = vpack.c.bf16 %v528, %v492
        %v755 = vpack.c.bf16 %v529, %v493
        %v756 = vpack.c.bf16 %v530, %v494
        %v757 = vpack.c.bf16 %v531, %v495
        %v758 = vpack.c.bf16 %v602, %v565
        %v759 = vpack.c.bf16 %v603, %v566
        %v760 = vpack.c.bf16 %v604, %v567
        %v761 = vpack.c.bf16 %v605, %v568
        %v762 = vpack.c.bf16 %v639, %v443
        %v763 = vpack.c.bf16 %v640, %v444
        %v764 = vpack.c.bf16 %v641, %v445
        %v765 = vpack.c.bf16 %v642, %v446
        %v766 = vpack.c.bf16 %v713, %v676
        %v767 = vpack.c.bf16 %v714, %v677
        %v768 = vpack.c.bf16 %v715, %v678
        %v769 = vpack.c.bf16 %v716, %v679
        %v770 = vpack.c.bf16 %v750, %v750
        %v771 = vpack.c.bf16 %v751, %v751
        %v772 = vpack.c.bf16 %v752, %v752
        %v773 = vpack.c.bf16 %v753, %v753
        %v774 = vld [vmem:[%s2] sm:$0x3]
        %v775 = vld [vmem:[%s5] sm:$0xf]
        %777 = vset.pattern.permute.xlu0 0
        %778 = vperm.xlu0 %777, %v775
        %v779 = vpop.permute.xlu0 %778
        %vm781 = vcmask 588800
        %v783 = vsel %vm781, %v774, 0
        %vm785 = vcmask 1043456
        %v787 = vsel %vm785, %v770, 0
        %v790 = vsel %vm785, %v771, 0
        %v793 = vsel %vm785, %v772, 0
        %v796 = vsel %vm785, %v773, 0
        %798 = vmatprep.subr.bf16.mxu0 %v755
        %799 = vmatpush1.bf16.msra.mxu0 %v754
        %800 = vmatprep.subr.bf16.mxu0 %v759
        %801 = vmatpush1.bf16.msra.mxu0 %v758
        %802 = vmatprep.subr.bf16.mxu0 %v763
        %803 = vmatpush1.bf16.msra.mxu0 %v762
        %804 = vmatprep.subr.bf16.mxu0 %v767
        %805 = vmatpush1.bf16.msra.mxu0 %v766
        %806 = vmatprep.subr.bf16.mxu0 %v790
        %807 = vmatpush1.bf16.msra.mxu0 %v787
        %808 = vmatprep.subr.bf16.mxu0 0
        %809 = vmatpush1.bf16.msra.mxu0 0
        %810 = vmatprep.subr.bf16.mxu0 0
        %811 = vmatpush1.bf16.msra.mxu0 0
        %812 = vmatprep.subr.bf16.mxu0 0
        %813 = vmatpush1.bf16.msra.mxu0 0
        %814 = vmatprep.subr.bf16.mxu0 0
        %815 = vmatpush1.bf16.msra.mxu0 0
        %816 = vmatprep.subr.bf16.mxu0 0
        %817 = vmatpush1.bf16.msra.mxu0 0
        %818 = vmatprep.subr.bf16.mxu0 0
        %819 = vmatpush1.bf16.msra.mxu0 0
        %820 = vmatprep.subr.bf16.mxu0 0
        %821 = vmatpush1.bf16.msra.mxu0 0
        %822 = vmatprep.subr.bf16.mxu0 0
        %823 = vmatpush1.bf16.msra.mxu0 0
        %824 = vmatprep.subr.bf16.mxu0 0
        %825 = vmatpush1.bf16.msra.mxu0 0
        %826 = vmatprep.subr.bf16.mxu0 0
        %827 = vmatpush1.bf16.msra.mxu0 0
        %828 = vmatprep.subr.bf16.mxu0 0
        %829 = vmatpush1.bf16.msra.mxu0 0
        %830 = vmatprep.mubr.bf16.mxu0 0
        %831 = vmatmul.mubr.bf16.gmra.mrb[0].mxu0 %v783
        %v832 = vpop.f32.mrb[0].mxu0
        %v833 = vadd.f32 %v779, %v832
        %v834 = vpop.f32.mrb[0].mxu0
        %v835 = vadd.f32 %v779, %v834
        %v836 = vpop.f32.mrb[0].mxu0
        %v837 = vpop.f32.mrb[0].mxu0
        %838 = vdwg.mxu0
        %839 = vmatprep.subr.bf16.mxu0 %v757
        %840 = vmatpush1.bf16.msra.mxu0 %v756
        %841 = vmatprep.subr.bf16.mxu0 %v761
        %842 = vmatpush1.bf16.msra.mxu0 %v760
        %843 = vmatprep.subr.bf16.mxu0 %v765
        %844 = vmatpush1.bf16.msra.mxu0 %v764
        %845 = vmatprep.subr.bf16.mxu0 %v769
        %846 = vmatpush1.bf16.msra.mxu0 %v768
        %847 = vmatprep.subr.bf16.mxu0 %v796
        %848 = vmatpush1.bf16.msra.mxu0 %v793
        %849 = vmatprep.subr.bf16.mxu0 0
        %850 = vmatpush1.bf16.msra.mxu0 0
        %851 = vmatprep.subr.bf16.mxu0 0
        %852 = vmatpush1.bf16.msra.mxu0 0
        %853 = vmatprep.subr.bf16.mxu0 0
        %854 = vmatpush1.bf16.msra.mxu0 0
        %855 = vmatprep.subr.bf16.mxu0 0
        %856 = vmatpush1.bf16.msra.mxu0 0
        %857 = vmatprep.subr.bf16.mxu0 0
        %858 = vmatpush1.bf16.msra.mxu0 0
        %859 = vmatprep.subr.bf16.mxu0 0
        %860 = vmatpush1.bf16.msra.mxu0 0
        %861 = vmatprep.subr.bf16.mxu0 0
        %862 = vmatpush1.bf16.msra.mxu0 0
        %863 = vmatprep.subr.bf16.mxu0 0
        %864 = vmatpush1.bf16.msra.mxu0 0
        %865 = vmatprep.subr.bf16.mxu0 0
        %866 = vmatpush1.bf16.msra.mxu0 0
        %867 = vmatprep.subr.bf16.mxu0 0
        %868 = vmatpush1.bf16.msra.mxu0 0
        %869 = vmatprep.subr.bf16.mxu0 0
        %870 = vmatpush1.bf16.msra.mxu0 0
        %871 = vmatprep.mubr.bf16.mxu0 0
        %872 = vmatmul.mubr.bf16.gmra.mrb[0].mxu0 %v783
        %v873 = vpop.f32.mrb[0].mxu0
        %v874 = vadd.f32 %v779, %v873
        %v875 = vpop.f32.mrb[0].mxu0
        %v876 = vadd.f32 %v779, %v875
        %v877 = vpop.f32.mrb[0].mxu0
        %v878 = vpop.f32.mrb[0].mxu0
        %879 = vdwg.mxu0
        %v880 = vmax.f32 %v833, 0.0
        %v881 = vmax.f32 %v835, 0.0
        %v882 = vmax.f32 %v874, 0.0
        %v883 = vmax.f32 %v876, 0.0
        %v884 = vpack.c.bf16 %v880, %v880
        %v885 = vpack.c.bf16 %v881, %v881
        %v886 = vpack.c.bf16 %v882, %v882
        %v887 = vpack.c.bf16 %v883, %v883
        %v888 = vld [vmem:[%s3] sm:$0xf]
        %v889 = vld [vmem:[%s3 + $0x4] sm:$0xf]
        %v890 = vld [vmem:[%s6] sm:$0xff]
        %v891 = vld [vmem:[%s6 + $0x8] sm:$0xff]
        %893 = vset.pattern.permute.xlu0 0
        %894 = vperm.xlu0 %893, %v890
        %v895 = vpop.permute.xlu0 %894
        %898 = vset.pattern.permute.xlu0 0
        %899 = vperm.xlu0 %898, %v891
        %v900 = vpop.permute.xlu0 %899
        %v904 = vunpack.c.l.b16 %v888
        %v905 = vunpack.c.l.b16 %v889
        %v906 = vpack.c.b16 %v905, %v904
        %vm907 = vcmask 31744
        %v909 = vsel %vm907, %v906, 0
        %vm911 = vcmask 1041408
        %v913 = vsel %vm911, %v884, 0
        %v916 = vsel %vm911, %v885, 0
        %v919 = vsel %vm911, %v886, 0
        %v922 = vsel %vm911, %v887, 0
        %924 = vmatprep.subr.bf16.mxu0 %v916
        %925 = vmatpush1.bf16.msra.mxu0 %v913
        %926 = vmatprep.subr.bf16.mxu0 0
        %927 = vmatpush1.bf16.msra.mxu0 0
        %928 = vmatprep.subr.bf16.mxu0 0
        %929 = vmatpush1.bf16.msra.mxu0 0
        %930 = vmatprep.subr.bf16.mxu0 0
        %931 = vmatpush1.bf16.msra.mxu0 0
        %932 = vmatprep.subr.bf16.mxu0 0
        %933 = vmatpush1.bf16.msra.mxu0 0
        %934 = vmatprep.subr.bf16.mxu0 0
        %935 = vmatpush1.bf16.msra.mxu0 0
        %936 = vmatprep.subr.bf16.mxu0 0
        %937 = vmatpush1.bf16.msra.mxu0 0
        %938 = vmatprep.subr.bf16.mxu0 0
        %939 = vmatpush1.bf16.msra.mxu0 0
        %940 = vmatprep.subr.bf16.mxu0 0
        %941 = vmatpush1.bf16.msra.mxu0 0
        %942 = vmatprep.subr.bf16.mxu0 0
        %943 = vmatpush1.bf16.msra.mxu0 0
        %944 = vmatprep.subr.bf16.mxu0 0
        %945 = vmatpush1.bf16.msra.mxu0 0
        %946 = vmatprep.subr.bf16.mxu0 0
        %947 = vmatpush1.bf16.msra.mxu0 0
        %948 = vmatprep.subr.bf16.mxu0 0
        %949 = vmatpush1.bf16.msra.mxu0 0
        %950 = vmatprep.subr.bf16.mxu0 0
        %951 = vmatpush1.bf16.msra.mxu0 0
        %952 = vmatprep.subr.bf16.mxu0 0
        %953 = vmatpush1.bf16.msra.mxu0 0
        %954 = vmatprep.subr.bf16.mxu0 0
        %955 = vmatpush1.bf16.msra.mxu0 0
        %956 = vmatprep.mubr.bf16.mxu0 0
        %957 = vmatmul.mubr.bf16.gmra.mrb[0].mxu0 %v909
        %v958 = vpop.f32.mrb[0].mxu0
        %v959 = vadd.f32 %v895, %v958
        %v960 = vpop.f32.mrb[0].mxu0
        %v961 = vadd.f32 %v895, %v960
        %v962 = vpop.f32.mrb[0].mxu0
        %v963 = vadd.f32 %v900, %v962
        %v964 = vpop.f32.mrb[0].mxu0
        %v965 = vadd.f32 %v900, %v964
        %966 = vdwg.mxu0
        %967 = vmatprep.subr.bf16.mxu0 %v922
        %968 = vmatpush1.bf16.msra.mxu0 %v919
        %969 = vmatprep.subr.bf16.mxu0 0
        %970 = vmatpush1.bf16.msra.mxu0 0
        %971 = vmatprep.subr.bf16.mxu0 0
        %972 = vmatpush1.bf16.msra.mxu0 0
        %973 = vmatprep.subr.bf16.mxu0 0
        %974 = vmatpush1.bf16.msra.mxu0 0
        %975 = vmatprep.subr.bf16.mxu0 0
        %976 = vmatpush1.bf16.msra.mxu0 0
        %977 = vmatprep.subr.bf16.mxu0 0
        %978 = vmatpush1.bf16.msra.mxu0 0
        %979 = vmatprep.subr.bf16.mxu0 0
        %980 = vmatpush1.bf16.msra.mxu0 0
        %981 = vmatprep.subr.bf16.mxu0 0
        %982 = vmatpush1.bf16.msra.mxu0 0
        %983 = vmatprep.subr.bf16.mxu0 0
        %984 = vmatpush1.bf16.msra.mxu0 0
        %985 = vmatprep.subr.bf16.mxu0 0
        %986 = vmatpush1.bf16.msra.mxu0 0
        %987 = vmatprep.subr.bf16.mxu0 0
        %988 = vmatpush1.bf16.msra.mxu0 0
        %989 = vmatprep.subr.bf16.mxu0 0
        %990 = vmatpush1.bf16.msra.mxu0 0
        %991 = vmatprep.subr.bf16.mxu0 0
        %992 = vmatpush1.bf16.msra.mxu0 0
        %993 = vmatprep.subr.bf16.mxu0 0
        %994 = vmatpush1.bf16.msra.mxu0 0
        %995 = vmatprep.subr.bf16.mxu0 0
        %996 = vmatpush1.bf16.msra.mxu0 0
        %997 = vmatprep.subr.bf16.mxu0 0
        %998 = vmatpush1.bf16.msra.mxu0 0
        %999 = vmatprep.mubr.bf16.mxu0 0
        %1000 = vmatmul.mubr.bf16.gmra.mrb[0].mxu0 %v909
        %v1001 = vpop.f32.mrb[0].mxu0
        %v1002 = vadd.f32 %v895, %v1001
        %v1003 = vpop.f32.mrb[0].mxu0
        %v1004 = vadd.f32 %v895, %v1003
        %v1005 = vpop.f32.mrb[0].mxu0
        %v1006 = vadd.f32 %v900, %v1005
        %v1007 = vpop.f32.mrb[0].mxu0
        %v1008 = vadd.f32 %v900, %v1007
        %1009 = vdwg.mxu0
        %v1010 = vadd.f32 %v959, %v338
        %v1011 = vadd.f32 %v961, %v339
        %v1012 = vadd.f32 %v1002, %v340
        %v1013 = vadd.f32 %v1004, %v341
        %v1014 = vadd.f32 %v963, %v342
        %v1015 = vadd.f32 %v965, %v343
        %v1016 = vadd.f32 %v1006, %v344
        %v1017 = vadd.f32 %v1008, %v345
        %v1018 = vmax.f32 %v1010, 0.0
        %v1019 = vmax.f32 %v1011, 0.0
        %v1020 = vmax.f32 %v1012, 0.0
        %v1021 = vmax.f32 %v1013, 0.0
        %v1022 = vmax.f32 %v1014, 0.0
        %v1023 = vmax.f32 %v1015, 0.0
        %v1024 = vmax.f32 %v1016, 0.0
        %v1025 = vmax.f32 %v1017, 0.0
        %1026 = vst [vmem:[%s336] sm:$0xff] %v1018
        %1027 = vst [vmem:[%s336 + $0x8] sm:$0xff] %v1019
        %1028 = vst [vmem:[%s336 + $0x10] sm:$0xff] %v1020
        %1029 = vst [vmem:[%s336 + $0x18] sm:$0xff] %v1021
        %1030 = vst [vmem:[%s336 + $0x20] sm:$0xff] %v1022
        %1031 = vst [vmem:[%s336 + $0x28] sm:$0xff] %v1023
        %1032 = vst [vmem:[%s336 + $0x30] sm:$0xff] %v1024
        %1033 = vst [vmem:[%s336 + $0x38] sm:$0xff] %v1025
        %s1034 = sand.u32 %s207, 1
        %s1035 = scalar_lea.sflag [#allocation4], %s1034
        %s1036 = sand.u32 %s207, 1
        %s1037 = smul.addr %s1036, 64
        %s1038 = scalar_lea.vmem [#allocation7], %s1037
        // Predicated region
        $region61: #{tpu_custom_call.1} parent=51 // pred_check
          %p1039 = pneg %p217
        $region62: #{tpu_custom_call.1} parent=51 // pred_check_branch
          %1041 = sbr.rel (%p1039) target = $region64
        $region63: #{tpu_custom_call.1} parent=51 // pred_region
          %s1043 = ssub.s32 1024, 1024
          %1044 = vsyncadd %s1035, %s1043
          %s1045 = smul.addr %s26, 8
          %s1046 = smul.addr %s1045, 128
          %s1047 = scalar_lea.hbm %s8, %s1046
          %s1048 = sshll.u32 %s1038, 4
          %s1049 = int_to_ptr.vmem [resolvable:$true] %s1048
          %1054 = dma.vmem_to_hbm [thread:$0]  %s1049, 1024, %s1047, %s1035, 512, 512, 32
        $region64: #{tpu_custom_call.1} parent=51 // pred_fallthru
          _
      $region52: #{tpu_custom_call.1} parent=5 // pred_fallthru
        _
      %p1055 = scmp.le.s32.totalorder 2, %s21
      // Predicated region
      $region65: #{tpu_custom_call.1} parent=5 // pred_check
        %p1056 = pneg %p1055
      $region66: #{tpu_custom_call.1} parent=5 // pred_check_branch
        %1058 = sbr.rel (%p1056) target = $region68
      $region67: #{tpu_custom_call.1} parent=5 // pred_region
        %s1059 = ssub.s32 %s21, 2
        // Predicated region
        $region69: #{tpu_custom_call.1} parent=67 // pred_check
          %p1060 = pneg %p223
        $region70: #{tpu_custom_call.1} parent=67 // pred_check_branch
          %1062 = sbr.rel (%p1060) target = $region72
        $region71: #{tpu_custom_call.1} parent=67 // pred_region
          %s1063 = sand.u32 %s208, 1
          %s1064 = scalar_lea.sflag [#allocation4], %s1063
          %s1065 = sand.u32 %s208, 1
          %s1066 = smul.addr %s1065, 64
          %s1067 = scalar_lea.vmem [#allocation7], %s1066
          %1068 = dma.done %s1064, 1024
        $region72: #{tpu_custom_call.1} parent=67 // pred_fallthru
          _
      $region68: #{tpu_custom_call.1} parent=5 // pred_fallthru
        _
    $region6: #{tpu_custom_call.1} parent=1 // loop_footer
      %s25 = sadd.s32 1, %s21
    $region7: #{tpu_custom_call.1} parent=1 // loop_footer_branch
      %20 = sbr.rel target = $region3
    $region8: #{tpu_custom_call.1} parent=1 // loop_exit
      _
    %1069 = vsyncpa [#allocation3], 1
    %s1070 = scalar_lea.sflag [#allocation3], 1
    %1071 = vsyncpa %s1070, 1
    %1072 = vsyncpa [#allocation6], 1
    %1073 = vsyncpa [#allocation4], 1
    %s1074 = scalar_lea.sflag [#allocation4], 1
    %1075 = vsyncpa %s1074, 1

</llo_original>
